<compile_context>
chip_gen: v5e
topology: v5e:2x2
jax: 0.10.0
libtpu: 0.0.40
codegen_flags: <defaults>
</compile_context>

<pallas_src>
import jax
import jax.numpy as jnp
from jax.experimental import pallas as pl
from jax.experimental.pallas import tpu as pltpu


def _round_up(x, m):
    return ((x + m - 1) // m) * m


def _cdiv(a, b):
    return (a + b - 1) // b


def _vmem_cap_bytes():
    # Physical VMEM per TensorCore minus headroom for compiler-internal scratch.
    try:
        cap = int(pltpu.get_tpu_info().vmem_capacity_bytes)
    except Exception:
        cap = 64 * 1024 * 1024  # v7x-safe fallback (smallest per-TC VMEM)
    return cap - 16 * 1024 * 1024


def bert_cls_head_kernel(x_ref, w1_ref, b1_ref, w2_ref, b2_ref, o_ref):
    # x: [TM, Hp] f32/bf16 | w1: [Hp, Hp] bf16 | b1: [1, Hp] f32
    # w2: [Hp, Lp] bf16    | b2: [1, Lp] f32   | o: [TM, Lp] f32
    # Dropout layers are identity in eval mode (inference semantics).
    # TODO(synk): training-mode dropout (Bernoulli masking) not implemented; eval-mode identity used.
    x = x_ref[...].astype(jnp.bfloat16)            # no-op if caller passed bf16
    h = jnp.dot(x, w1_ref[...], preferred_element_type=jnp.float32)
    h = jnp.tanh(h + b1_ref[...])                  # f32 bias add + tanh (EUP slot; v5e-safe)
    out = jnp.dot(h.astype(jnp.bfloat16), w2_ref[...],
                  preferred_element_type=jnp.float32)
    o_ref[...] = (out + b2_ref[...]).astype(o_ref.dtype)


def prepare_bert_cls_head_weights(w_dense, b_dense, w_out, b_out):
    """One-time (model-load) weight prep: zero-pad H/L to multiples of 128 and
    cast weights to bf16. Do NOT call this per forward pass.

    w_dense: [H, H] (pre-transposed nn.Linear weight), b_dense: [H]
    w_out:   [H, L] (pre-transposed),                  b_out:   [L]
    Returns (w1, b1, w2, b2, H, L) with padded shapes [Hp,Hp]/[1,Hp]/[Hp,Lp]/[1,Lp].
    """
    H = w_dense.shape[0]
    L = w_out.shape[1]
    Hp = _round_up(H, 128)
    Lp = _round_up(L, 128)
    # Zero padding is exact: padded W1 columns give tanh(0 + 0) = 0 and padded
    # W2 rows contribute nothing to the logits.
    w1 = jnp.zeros((Hp, Hp), jnp.float32).at[:H, :H].set(w_dense).astype(jnp.bfloat16)
    w2 = jnp.zeros((Hp, Lp), jnp.float32).at[:H, :L].set(w_out).astype(jnp.bfloat16)
    b1 = jnp.zeros((1, Hp), jnp.float32).at[0, :H].set(b_dense.astype(jnp.float32))
    b2 = jnp.zeros((1, Lp), jnp.float32).at[0, :L].set(b_out.astype(jnp.float32))
    return w1, b1, w2, b2, H, L


def bert_classification_head(feature, w1, b1, w2, b2, num_labels_out, *, tm=512):
    """feature: [B, H] (f32 or bf16); w1/b1/w2/b2: pre-padded outputs of
    prepare_bert_cls_head_weights; num_labels_out: logical L.  -> [B, L] f32."""
    B, H = feature.shape
    Hp = w1.shape[0]
    Lp = w2.shape[1]
    L = num_labels_out

    # Batch tiling: pick the number of tiles first, then size TM so padding is
    # at most ~7 rows per tile (avoids the round_up(B, TM) ~2x blowup).
    nt = max(1, _cdiv(B, tm))
    if nt == 1 and B >= 512:
        # Enough work to split across v7x's two TensorCores; for smaller B the
        # duplicated per-TC weight DMA is not worth it.
        nt = 2
    TM = _round_up(_cdiv(B, nt), 8)
    grid_n = _cdiv(B, TM)
    Bp = grid_n * TM

    # Skip the activation pad/copy entirely when shapes already line up
    # (common BERT case: H multiple of 128, B multiple of 8-aligned TM).
    if Bp == B and Hp == H:
        xp = feature
    else:
        xp = jnp.zeros((Bp, Hp), feature.dtype).at[:B, :H].set(feature)

    # VMEM budget: single-buffered weights/biases (Buffered(1)), double-buffered
    # activation/output tiles, + headroom; floor 32 MiB, cap = physical - 16 MiB.
    vmem_need = ((Hp * Hp + Hp * Lp) * 2                # bf16 weights, 1 buffer
                 + (Hp + Lp) * 4                        # f32 biases, 1 buffer
                 + 2 * TM * Hp * xp.dtype.itemsize      # activations, 2 buffers
                 + 2 * TM * Lp * 4)                     # output, 2 buffers
    vmem_bytes = int(max(32 * 1024 * 1024,
                         min(_vmem_cap_bytes(), vmem_need + (4 << 20))))

    cost = pl.CostEstimate(
        flops=2 * Bp * Hp * (Hp + Lp),
        transcendentals=Bp * Hp,
        bytes_accessed=(xp.size * xp.dtype.itemsize
                        + w1.size * 2 + w2.size * 2
                        + b1.size * 4 + b2.size * 4
                        + Bp * Lp * 4),
    )

    out = pl.pallas_call(
        bert_cls_head_kernel,
        out_shape=jax.ShapeDtypeStruct((Bp, Lp), jnp.float32),
        grid=(grid_n,),
        in_specs=[
            # Activations: tiled over batch, double-buffered (default).
            pl.BlockSpec((TM, Hp), lambda i: (i, 0)),
            # Weights/biases: constant index_map -> VMEM-resident; single buffer.
            pl.BlockSpec((Hp, Hp), lambda i: (0, 0), pipeline_mode=pl.Buffered(1)),
            pl.BlockSpec((1, Hp), lambda i: (0, 0), pipeline_mode=pl.Buffered(1)),
            pl.BlockSpec((Hp, Lp), lambda i: (0, 0), pipeline_mode=pl.Buffered(1)),
            pl.BlockSpec((1, Lp), lambda i: (0, 0), pipeline_mode=pl.Buffered(1)),
        ],
        out_specs=pl.BlockSpec((TM, Lp), lambda i: (i, 0)),
        compiler_params=pltpu.CompilerParams(
            dimension_semantics=("parallel",),          # batch tiles shard across TCs
            vmem_limit_bytes=vmem_bytes,
        ),
        cost_estimate=cost,
    )(xp, w1, b1, w2, b2)

    return out[:B, :L]


if __name__ == "__main__":
    # Small config: hidden_size=32, num_labels=4 -> out_proj features = 3, batch=8
    B, H, NUM_LABELS = 8, 32, 4
    L = NUM_LABELS - 1

    key = jax.random.PRNGKey(0)
    k_feat, k_w1, k_b1, k_w2, k_b2 = jax.random.split(key, 5)

    feature = jax.random.normal(k_feat, (B, H), dtype=jnp.float32)
    # nn.Linear weights stored pre-transposed: [in_features, out_features]
    w_dense = jax.random.normal(k_w1, (H, H), dtype=jnp.float32) * 0.02
    b_dense = jax.random.normal(k_b1, (H,), dtype=jnp.float32) * 0.02
    w_out = jax.random.normal(k_w2, (H, L), dtype=jnp.float32) * 0.02
    b_out = jax.random.normal(k_b2, (L,), dtype=jnp.float32) * 0.02

    # One-time weight prep (model-load time), NOT part of the per-call path.
    w1, b1, w2, b2, _, _ = prepare_bert_cls_head_weights(w_dense, b_dense, w_out, b_out)

    out = bert_classification_head(feature, w1, b1, w2, b2, L)
    out = jax.block_until_ready(out)

    # Reference in plain f32 JAX (eval-mode dropout = identity). Kernel uses
    # bf16 MXU operands with f32 accumulation -> bf16-level tolerance.
    ref = jnp.tanh(feature @ w_dense + b_dense) @ w_out + b_out
    assert out.shape == (B, L)
    assert jnp.allclose(out, ref, atol=2e-3, rtol=2e-2), \
        float(jnp.max(jnp.abs(out - ref)))

    print("KERNEL_OK")
</pallas_src>

<mosaic_0001>
module attributes {stable_mosaic.version = 11 : i64} {
  func.func @bert_cls_head_kernel(%arg0: i32, %arg1: memref<8x128xf32, #tpu.memory_space<vmem>>, %arg2: memref<128x128xbf16, #tpu.memory_space<vmem>>, %arg3: memref<1x128xf32, #tpu.memory_space<vmem>>, %arg4: memref<128x128xbf16, #tpu.memory_space<vmem>>, %arg5: memref<1x128xf32, #tpu.memory_space<vmem>>, %arg6: memref<8x128xf32, #tpu.memory_space<vmem>>) attributes {dimension_semantics = [#tpu.dimension_semantics<parallel>], iteration_bounds = array<i64: 1>, scalar_prefetch = 0 : i64, scratch_operands = 0 : i64, tpu.core_type = #tpu.core_type<tc>, window_params = [{transform_indices = @transform_0, window_bounds = array<i64: 8, 128>}, {pipeline_mode = #tpu.pipeline_mode<synchronous>, transform_indices = @transform_1, window_bounds = array<i64: 128, 128>}, {pipeline_mode = #tpu.pipeline_mode<synchronous>, transform_indices = @transform_2, window_bounds = array<i64: 1, 128>}, {pipeline_mode = #tpu.pipeline_mode<synchronous>, transform_indices = @transform_3, window_bounds = array<i64: 128, 128>}, {pipeline_mode = #tpu.pipeline_mode<synchronous>, transform_indices = @transform_4, window_bounds = array<i64: 1, 128>}, {transform_indices = @transform_5, window_bounds = array<i64: 8, 128>}]} {
    %c0 = arith.constant 0 : index
    %c0_0 = arith.constant 0 : index
    %0 = vector.load %arg1[%c0, %c0_0] : memref<8x128xf32, #tpu.memory_space<vmem>>, vector<8x128xf32>
    %1 = arith.truncf %0 : vector<8x128xf32> to vector<8x128xbf16>
    %c0_1 = arith.constant 0 : index
    %c0_2 = arith.constant 0 : index
    %2 = vector.load %arg2[%c0_1, %c0_2] : memref<128x128xbf16, #tpu.memory_space<vmem>>, vector<128x128xbf16>
    %cst = arith.constant dense<0.000000e+00> : vector<8x128xf32>
    %3 = tpu.matmul %1, %2, %cst {dimension_numbers = #tpu.dot_dimension_numbers<[1], [0], [0], [1], [0, 0, 1, 1], [], []>} : vector<8x128xbf16>, vector<128x128xbf16>, vector<8x128xf32> -> vector<8x128xf32>
    %c0_3 = arith.constant 0 : index
    %c0_4 = arith.constant 0 : index
    %4 = vector.load %arg3[%c0_3, %c0_4] : memref<1x128xf32, #tpu.memory_space<vmem>>, vector<1x128xf32>
    %5 = vector.broadcast %4 : vector<1x128xf32> to vector<8x128xf32>
    %6 = arith.addf %3, %5 : vector<8x128xf32>
    %7 = math.tanh %6 : vector<8x128xf32>
    %8 = arith.truncf %7 : vector<8x128xf32> to vector<8x128xbf16>
    %c0_5 = arith.constant 0 : index
    %c0_6 = arith.constant 0 : index
    %9 = vector.load %arg4[%c0_5, %c0_6] : memref<128x128xbf16, #tpu.memory_space<vmem>>, vector<128x128xbf16>
    %cst_7 = arith.constant dense<0.000000e+00> : vector<8x128xf32>
    %10 = tpu.matmul %8, %9, %cst_7 {dimension_numbers = #tpu.dot_dimension_numbers<[1], [0], [0], [1], [0, 0, 1, 1], [], []>} : vector<8x128xbf16>, vector<128x128xbf16>, vector<8x128xf32> -> vector<8x128xf32>
    %c0_8 = arith.constant 0 : index
    %c0_9 = arith.constant 0 : index
    %11 = vector.load %arg5[%c0_8, %c0_9] : memref<1x128xf32, #tpu.memory_space<vmem>>, vector<1x128xf32>
    %12 = vector.broadcast %11 : vector<1x128xf32> to vector<8x128xf32>
    %13 = arith.addf %10, %12 : vector<8x128xf32>
    %c0_10 = arith.constant 0 : index
    %c0_11 = arith.constant 0 : index
    %14 = vector.load %arg6[%c0_10, %c0_11] : memref<8x128xf32, #tpu.memory_space<vmem>>, vector<8x128xf32>
    tpu.vector_store %arg6[%c0_10, %c0_11], %13 {strides = array<i32>} : memref<8x128xf32, #tpu.memory_space<vmem>>, vector<8x128xf32>,
    return
  }
  func.func @transform_0(%arg0: i32) -> (i32, i32) {
    %c0_i32 = arith.constant 0 : i32
    %c0_i32_0 = arith.constant 0 : i32
    return %arg0, %c0_i32 : i32, i32
  }
  func.func @transform_1(%arg0: i32) -> (i32, i32) {
    %c0_i32 = arith.constant 0 : i32
    %c0_i32_0 = arith.constant 0 : i32
    %c0_i32_1 = arith.constant 0 : i32
    return %c0_i32, %c0_i32_0 : i32, i32
  }
  func.func @transform_2(%arg0: i32) -> (i32, i32) {
    %c0_i32 = arith.constant 0 : i32
    %c0_i32_0 = arith.constant 0 : i32
    %c0_i32_1 = arith.constant 0 : i32
    return %c0_i32, %c0_i32_0 : i32, i32
  }
  func.func @transform_3(%arg0: i32) -> (i32, i32) {
    %c0_i32 = arith.constant 0 : i32
    %c0_i32_0 = arith.constant 0 : i32
    %c0_i32_1 = arith.constant 0 : i32
    return %c0_i32, %c0_i32_0 : i32, i32
  }
  func.func @transform_4(%arg0: i32) -> (i32, i32) {
    %c0_i32 = arith.constant 0 : i32
    %c0_i32_0 = arith.constant 0 : i32
    %c0_i32_1 = arith.constant 0 : i32
    return %c0_i32, %c0_i32_0 : i32, i32
  }
  func.func @transform_5(%arg0: i32) -> (i32, i32) {
    %c0_i32 = arith.constant 0 : i32
    %c0_i32_0 = arith.constant 0 : i32
    return %arg0, %c0_i32 : i32, i32
  }
}

</mosaic_0001>

<llo_original>
// kernel: tpu_custom_call.1
$region0: #{tpu_custom_call.1}
  #allocation0 [shape = 'u32[]', space=smem, size = 0x4, offset = 0x4, fixed_abs, tag = 'smem constant byte address 0x4 - core index']
  #allocation1 [shape = 'u32[72,128]{1,0:T(1,128)}', space=vmem, size = 0x9000, scoped, tag = 'internal scratch']
  %s0 = inlined_call_operand.hbm [shape: f32[8,128], index: 0, kind: input, shape index: {}]
  %s1 = inlined_call_operand.hbm [shape: bf16[128,128], index: 1, kind: input, shape index: {}]
  %s2 = inlined_call_operand.vmem [shape: f32[1,128], index: 2, kind: input, shape index: {}]
  %s3 = inlined_call_operand.hbm [shape: bf16[128,128], index: 3, kind: input, shape index: {}]
  %s4 = inlined_call_operand.vmem [shape: f32[1,128], index: 4, kind: input, shape index: {}]
  %s5 = inlined_call_operand.hbm [shape: f32[8,128], index: 5, kind: output, shape index: {}]
  %s6 = sld [smem:[#allocation0]]
  $region42: #{tpu_custom_call.1} parent=0
    _
  %s8 = ssub.s32 1, %s6
  %s9 = scalar_select 0, %s8, %s6
  $region1: #{tpu_custom_call.1} parent=0
    #allocation2 [shape = 'u8[4096]{0}', space=vmem, size = 0x1000, scoped, tag = 'input window, operand 0, single buffered']
    #allocation3 [shape = 's32[1]{0}', space=sflag, size = 0x4, scoped, tag = 'scoped memory for tpu_custom_call.1']
    #allocation4 [shape = 's32[1]{0}', space=sflag, size = 0x4, scoped, tag = 'scoped memory for tpu_custom_call.1']
    #allocation5 [shape = 'u8[32768]{0}', space=vmem, size = 0x8000, scoped, tag = 'input window, operand 1, single buffered']
    #allocation6 [shape = 's32[1]{0}', space=sflag, size = 0x4, scoped, tag = 'scoped memory for tpu_custom_call.1']
    #allocation7 [shape = 'u8[32768]{0}', space=vmem, size = 0x8000, scoped, tag = 'input window, operand 3, single buffered']
    #allocation8 [shape = 'u8[4096]{0}', space=vmem, size = 0x1000, scoped, tag = 'output window, operand 0, single buffered']
    %10 = vsyncpa [#allocation3], 0
    %11 = vsyncpa [#allocation6], 0
    %12 = vsyncpa [#allocation4], 0
    // Predicated region
    $region2: #{tpu_custom_call.1} parent=1 // pred_check
      _
    $region3: #{tpu_custom_call.1} parent=1 // pred_check_branch
      %14 = sbr.rel (0) target = $region5
    $region4: #{tpu_custom_call.1} parent=1 // pred_region
      %16 = vsyncadd [#allocation3], 0
      %s18 = sshll.u32 %s0, 4
      %s19 = int_to_ptr.hbm [resolvable:$true] %s18
      %s20 = sshll.u32 [#allocation2], 4
      %s21 = int_to_ptr.vmem [resolvable:$true] %s20
      %23 = dma.hbm_to_vmem [thread:$0]  %s19, 128, %s21, [#allocation3]
    $region5: #{tpu_custom_call.1} parent=1 // pred_fallthru
      _
    // Predicated region
    $region6: #{tpu_custom_call.1} parent=1 // pred_check
      _
    $region7: #{tpu_custom_call.1} parent=1 // pred_check_branch
      %25 = sbr.rel (0) target = $region9
    $region8: #{tpu_custom_call.1} parent=1 // pred_region
      %27 = vsyncadd [#allocation6], 0
      %s28 = sshll.u32 %s1, 4
      %s29 = int_to_ptr.hbm [resolvable:$true] %s28
      %s30 = sshll.u32 [#allocation5], 4
      %s31 = int_to_ptr.vmem [resolvable:$true] %s30
      %36 = dma.hbm_to_vmem [thread:$0]  %s29, 1024, %s31, [#allocation6], 64, 64, 4
    $region9: #{tpu_custom_call.1} parent=1 // pred_fallthru
      _
    // Predicated region
    $region10: #{tpu_custom_call.1} parent=1 // pred_check
      _
    $region11: #{tpu_custom_call.1} parent=1 // pred_check_branch
      %38 = sbr.rel (0) target = $region13
    $region12: #{tpu_custom_call.1} parent=1 // pred_region
      _
    $region13: #{tpu_custom_call.1} parent=1 // pred_fallthru
      _
    // Predicated region
    $region14: #{tpu_custom_call.1} parent=1 // pred_check
      _
    $region15: #{tpu_custom_call.1} parent=1 // pred_check_branch
      %40 = sbr.rel (0) target = $region17
    $region16: #{tpu_custom_call.1} parent=1 // pred_region
      %42 = vsyncadd [#allocation6], 0
      %s43 = sshll.u32 %s3, 4
      %s44 = int_to_ptr.hbm [resolvable:$true] %s43
      %s45 = sshll.u32 [#allocation7], 4
      %s46 = int_to_ptr.vmem [resolvable:$true] %s45
      %51 = dma.hbm_to_vmem [thread:$0]  %s44, 1024, %s46, [#allocation6], 64, 64, 4
    $region17: #{tpu_custom_call.1} parent=1 // pred_fallthru
      _
    // Predicated region
    $region18: #{tpu_custom_call.1} parent=1 // pred_check
      _
    $region19: #{tpu_custom_call.1} parent=1 // pred_check_branch
      %53 = sbr.rel (0) target = $region21
    $region20: #{tpu_custom_call.1} parent=1 // pred_region
      _
    $region21: #{tpu_custom_call.1} parent=1 // pred_fallthru
      _
    // Predicated region
    $region22: #{tpu_custom_call.1} parent=1 // pred_check
      _
    $region23: #{tpu_custom_call.1} parent=1 // pred_check_branch
      %55 = sbr.rel (0) target = $region25
    $region24: #{tpu_custom_call.1} parent=1 // pred_region
      %57 = dma.done [#allocation3], 128
    $region25: #{tpu_custom_call.1} parent=1 // pred_fallthru
      _
    // Predicated region
    $region26: #{tpu_custom_call.1} parent=1 // pred_check
      _
    $region27: #{tpu_custom_call.1} parent=1 // pred_check_branch
      %59 = sbr.rel (0) target = $region29
    $region28: #{tpu_custom_call.1} parent=1 // pred_region
      %61 = dma.done [#allocation6], 1024
    $region29: #{tpu_custom_call.1} parent=1 // pred_fallthru
      _
    // Predicated region
    $region30: #{tpu_custom_call.1} parent=1 // pred_check
      _
    $region31: #{tpu_custom_call.1} parent=1 // pred_check_branch
      %63 = sbr.rel (0) target = $region33
    $region32: #{tpu_custom_call.1} parent=1 // pred_region
      %65 = dma.done [#allocation6], 1024
    $region33: #{tpu_custom_call.1} parent=1 // pred_fallthru
      _
    %v66 = vld [vmem:[#allocation2] sm:$0xff]
    %v67 = vpack.c.bf16 %v66, %v66
    %v68 = vld [vmem:[#allocation5] sm:$0xf]
    %v69 = vld [vmem:[#allocation5 + $0x4] sm:$0xf]
    %v70 = vld [vmem:[#allocation5 + $0x8] sm:$0xf]
    %v71 = vld [vmem:[#allocation5 + $0xc] sm:$0xf]
    %v72 = vld [vmem:[#allocation5 + $0x10] sm:$0xf]
    %v73 = vld [vmem:[#allocation5 + $0x14] sm:$0xf]
    %v74 = vld [vmem:[#allocation5 + $0x18] sm:$0xf]
    %v75 = vld [vmem:[#allocation5 + $0x1c] sm:$0xf]
    %v76 = vld [vmem:[#allocation5 + $0x20] sm:$0xf]
    %v77 = vld [vmem:[#allocation5 + $0x24] sm:$0xf]
    %v78 = vld [vmem:[#allocation5 + $0x28] sm:$0xf]
    %v79 = vld [vmem:[#allocation5 + $0x2c] sm:$0xf]
    %v80 = vld [vmem:[#allocation5 + $0x30] sm:$0xf]
    %v81 = vld [vmem:[#allocation5 + $0x34] sm:$0xf]
    %v82 = vld [vmem:[#allocation5 + $0x38] sm:$0xf]
    %v83 = vld [vmem:[#allocation5 + $0x3c] sm:$0xf]
    %v84 = vld [vmem:[%s2] sm:$0x1]
    %v86 = vperm.slane %v84, 0
    %v104 = vunpack.c.l.b16 %v68
    %v105 = vunpack.c.l.b16 %v69
    %v106 = vunpack.c.l.b16 %v70
    %v107 = vunpack.c.l.b16 %v71
    %v108 = vunpack.c.l.b16 %v72
    %v109 = vunpack.c.l.b16 %v73
    %v110 = vunpack.c.l.b16 %v74
    %v111 = vunpack.c.l.b16 %v75
    %v112 = vunpack.c.l.b16 %v76
    %v113 = vunpack.c.l.b16 %v77
    %v114 = vunpack.c.l.b16 %v78
    %v115 = vunpack.c.l.b16 %v79
    %v116 = vunpack.c.l.b16 %v80
    %v117 = vunpack.c.l.b16 %v81
    %v118 = vunpack.c.l.b16 %v82
    %v119 = vunpack.c.l.b16 %v83
    %v120 = vpack.c.b16 %v105, %v104
    %v121 = vpack.c.b16 %v107, %v106
    %v122 = vpack.c.b16 %v109, %v108
    %v123 = vpack.c.b16 %v111, %v110
    %v124 = vpack.c.b16 %v113, %v112
    %v125 = vpack.c.b16 %v115, %v114
    %v126 = vpack.c.b16 %v117, %v116
    %v127 = vpack.c.b16 %v119, %v118
    %136 = vmatpush.bf16.msra.mxu0 %v127
    %137 = vmatpush.bf16.msra.mxu0 %v126
    %138 = vmatpush.bf16.msra.mxu0 %v125
    %139 = vmatpush.bf16.msra.mxu0 %v124
    %140 = vmatpush.bf16.msra.mxu0 %v123
    %141 = vmatpush.bf16.msra.mxu0 %v122
    %142 = vmatpush.bf16.msra.mxu0 %v121
    %143 = vmatpush.bf16.msra.mxu0 %v120
    %144 = vmatmul.bf16.gmra.mxu0 %v67
    %v145 = vpop.f32.mrf.mxu0
    %v146 = vadd.f32 %v86, %v145
    %v147 = vpop.f32.mrf.mxu0
    %148 = vdwg.mxu0
    %v149 = vtanh.pop %v146
    %v150 = vpack.c.bf16 %v149, %v149
    %v151 = vld [vmem:[#allocation7] sm:$0xf]
    %v152 = vld [vmem:[#allocation7 + $0x4] sm:$0xf]
    %v153 = vld [vmem:[#allocation7 + $0x8] sm:$0xf]
    %v154 = vld [vmem:[#allocation7 + $0xc] sm:$0xf]
    %v155 = vld [vmem:[#allocation7 + $0x10] sm:$0xf]
    %v156 = vld [vmem:[#allocation7 + $0x14] sm:$0xf]
    %v157 = vld [vmem:[#allocation7 + $0x18] sm:$0xf]
    %v158 = vld [vmem:[#allocation7 + $0x1c] sm:$0xf]
    %v159 = vld [vmem:[#allocation7 + $0x20] sm:$0xf]
    %v160 = vld [vmem:[#allocation7 + $0x24] sm:$0xf]
    %v161 = vld [vmem:[#allocation7 + $0x28] sm:$0xf]
    %v162 = vld [vmem:[#allocation7 + $0x2c] sm:$0xf]
    %v163 = vld [vmem:[#allocation7 + $0x30] sm:$0xf]
    %v164 = vld [vmem:[#allocation7 + $0x34] sm:$0xf]
    %v165 = vld [vmem:[#allocation7 + $0x38] sm:$0xf]
    %v166 = vld [vmem:[#allocation7 + $0x3c] sm:$0xf]
    %v167 = vld [vmem:[%s4] sm:$0x1]
    %v169 = vperm.slane %v167, 0
    %v187 = vunpack.c.l.b16 %v151
    %v188 = vunpack.c.l.b16 %v152
    %v189 = vunpack.c.l.b16 %v153
    %v190 = vunpack.c.l.b16 %v154
    %v191 = vunpack.c.l.b16 %v155
    %v192 = vunpack.c.l.b16 %v156
    %v193 = vunpack.c.l.b16 %v157
    %v194 = vunpack.c.l.b16 %v158
    %v195 = vunpack.c.l.b16 %v159
    %v196 = vunpack.c.l.b16 %v160
    %v197 = vunpack.c.l.b16 %v161
    %v198 = vunpack.c.l.b16 %v162
    %v199 = vunpack.c.l.b16 %v163
    %v200 = vunpack.c.l.b16 %v164
    %v201 = vunpack.c.l.b16 %v165
    %v202 = vunpack.c.l.b16 %v166
    %v203 = vpack.c.b16 %v188, %v187
    %v204 = vpack.c.b16 %v190, %v189
    %v205 = vpack.c.b16 %v192, %v191
    %v206 = vpack.c.b16 %v194, %v193
    %v207 = vpack.c.b16 %v196, %v195
    %v208 = vpack.c.b16 %v198, %v197
    %v209 = vpack.c.b16 %v200, %v199
    %v210 = vpack.c.b16 %v202, %v201
    %219 = vmatpush.bf16.msra.mxu0 %v210
    %220 = vmatpush.bf16.msra.mxu0 %v209
    %221 = vmatpush.bf16.msra.mxu0 %v208
    %222 = vmatpush.bf16.msra.mxu0 %v207
    %223 = vmatpush.bf16.msra.mxu0 %v206
    %224 = vmatpush.bf16.msra.mxu0 %v205
    %225 = vmatpush.bf16.msra.mxu0 %v204
    %226 = vmatpush.bf16.msra.mxu0 %v203
    %227 = vmatmul.bf16.gmra.mxu0 %v150
    %v228 = vpop.f32.mrf.mxu0
    %v229 = vadd.f32 %v169, %v228
    %v230 = vpop.f32.mrf.mxu0
    %231 = vdwg.mxu0
    %232 = vst [vmem:[#allocation8] sm:$0xff] %v229
    // Predicated region
    $region34: #{tpu_custom_call.1} parent=1 // pred_check
      _
    $region35: #{tpu_custom_call.1} parent=1 // pred_check_branch
      %234 = sbr.rel (0) target = $region37
    $region36: #{tpu_custom_call.1} parent=1 // pred_region
      %236 = vsyncadd [#allocation4], 0
      %s238 = sshll.u32 [#allocation8], 4
      %s239 = int_to_ptr.vmem [resolvable:$true] %s238
      %s240 = sshll.u32 %s5, 4
      %s241 = int_to_ptr.hbm [resolvable:$true] %s240
      %243 = dma.vmem_to_hbm [thread:$0]  %s239, 128, %s241, [#allocation4]
    $region37: #{tpu_custom_call.1} parent=1 // pred_fallthru
      _
    // Predicated region
    $region38: #{tpu_custom_call.1} parent=1 // pred_check
      _
    $region39: #{tpu_custom_call.1} parent=1 // pred_check_branch
      %245 = sbr.rel (0) target = $region41
    $region40: #{tpu_custom_call.1} parent=1 // pred_region
      %247 = dma.done [#allocation4], 128
    $region41: #{tpu_custom_call.1} parent=1 // pred_fallthru
      _
    %248 = vsyncpa [#allocation3], 1
    %249 = vsyncpa [#allocation6], 1
    %250 = vsyncpa [#allocation4], 1

</llo_original>
